<compile_context>
chip_gen: v7x
topology: tpu7x:2x2x1
jax: 0.10.0
libtpu: 0.0.40
codegen_flags: <defaults>
</compile_context>

<pallas_src>
import jax
import jax.numpy as jnp
from jax.experimental import pallas as pl
from jax.experimental.pallas import tpu as pltpu

_LANE = 1024  # lane-dense slab width for the tiled path (multiple of 128)


def linear_kernel(w_ref, b_ref, x_ref, o_ref):
    # w_ref: SMEM [1], b_ref: SMEM [1]
    # x_ref/o_ref: VMEM view — [B, 1] (gridless path) or [block_rows, 1024]
    # (tiled path).  Scalars are read once per invocation (no inner loop, so
    # no repeated SMEM->vreg broadcasts).
    w = w_ref[0]
    b = b_ref[0]
    o_ref[...] = x_ref[...] * w + b


def linear_pallas(x, weight, bias):
    """x: [B, 1] f32, weight: [1, 1] f32, bias: [1] f32 -> [B, 1] f32.

    Equivalent to PyTorch nn.Linear(1, 1): y = x @ W.T + b.
    """
    B, in_f = x.shape
    out_f, in_f2 = weight.shape
    assert in_f == 1 and in_f2 == 1 and out_f == 1

    w_flat = weight.reshape(1)  # flat 1-D SMEM scalar
    b_flat = bias.reshape(1)

    # ---- Large, aligned batches: lane-dense 2D slab, tiled + parallel grid.
    if B % _LANE == 0 and (B // _LANE) % 8 == 0:
        rows = B // _LANE
        if rows % 512 == 0:
            block_rows = 512          # 512x1024 f32 = 2 MiB/block
        elif rows % 256 == 0:
            block_rows = 256          # 256x1024 f32 = 1 MiB/block
        else:
            block_rows = 8            # still full-sublane, unmasked vst
        x_slab = x.reshape(rows, _LANE)

        y_slab = pl.pallas_call(
            linear_kernel,
            out_shape=jax.ShapeDtypeStruct((rows, _LANE), x.dtype),
            grid=(rows // block_rows,),
            in_specs=[
                pl.BlockSpec(memory_space=pltpu.SMEM),                 # weight [1]
                pl.BlockSpec(memory_space=pltpu.SMEM),                 # bias   [1]
                pl.BlockSpec((block_rows, _LANE), lambda i: (i, 0)),   # x slab
            ],
            out_specs=pl.BlockSpec((block_rows, _LANE), lambda i: (i, 0)),
            compiler_params=pltpu.CompilerParams(
                # Independent tiles: let both TensorCores (v7x) share them.
                dimension_semantics=("parallel",),
            ),
        )(w_flat, b_flat, x_slab)
        return y_slab.reshape(B, out_f)

    # ---- Small / unaligned batches: gridless, pass [B, 1] directly.
    # One masked store is cheaper than two relayout copies + extra dispatch.
    y = pl.pallas_call(
        linear_kernel,
        out_shape=jax.ShapeDtypeStruct((B, out_f), x.dtype),
        in_specs=[
            pl.BlockSpec(memory_space=pltpu.SMEM),   # weight [1]
            pl.BlockSpec(memory_space=pltpu.SMEM),   # bias   [1]
            pl.BlockSpec(memory_space=pltpu.VMEM),   # x      [B, 1]
        ],
        out_specs=pl.BlockSpec(memory_space=pltpu.VMEM),
    )(w_flat, b_flat, x)
    return y


if __name__ == "__main__":
    key = jax.random.PRNGKey(0)
    kx, kw, kb = jax.random.split(key, 3)

    # Deterministic parameters (nn.Linear(1,1): weight [1,1], bias [1]),
    # uniform(-1, 1) matching PyTorch's default bound 1/sqrt(fan_in) = 1.
    weight = jax.random.uniform(kw, (1, 1), dtype=jnp.float32, minval=-1.0, maxval=1.0)
    bias = jax.random.uniform(kb, (1,), dtype=jnp.float32, minval=-1.0, maxval=1.0)

    # --- Small-batch path (the module's natural usage): B = 8 samples.
    B = 8
    x = jax.random.normal(kx, (B, 1), dtype=jnp.float32)
    out = linear_pallas(x, weight, bias)
    out = jax.block_until_ready(out)
    ref = x @ weight.T + bias
    assert out.shape == (B, 1), out.shape
    assert jnp.allclose(out, ref, atol=1e-6), (out, ref)

    # --- Tiled lane-dense path (scale-up sanity check): B = 8 * 1024.
    B_big = 8 * _LANE
    x_big = jax.random.normal(kx, (B_big, 1), dtype=jnp.float32)
    out_big = linear_pallas(x_big, weight, bias)
    out_big = jax.block_until_ready(out_big)
    ref_big = x_big @ weight.T + bias
    assert out_big.shape == (B_big, 1), out_big.shape
    assert jnp.allclose(out_big, ref_big, atol=1e-6)

    print("KERNEL_OK")
</pallas_src>

<mosaic_0001>
module attributes {stable_mosaic.version = 11 : i64} {
  func.func @linear_kernel(%arg0: memref<1xf32, #tpu.memory_space<smem>>, %arg1: memref<1xf32, #tpu.memory_space<smem>>, %arg2: memref<8x1xf32, #tpu.memory_space<vmem>>, %arg3: memref<8x1xf32, #tpu.memory_space<vmem>>) attributes {dimension_semantics = [], scalar_prefetch = 0 : i64, scratch_operands = 0 : i64, tpu.core_type = #tpu.core_type<tc>} {
    %c0 = arith.constant 0 : index
    %0 = memref.load %arg0[%c0] : memref<1xf32, #tpu.memory_space<smem>>
    %c0_0 = arith.constant 0 : index
    %1 = memref.load %arg1[%c0_0] : memref<1xf32, #tpu.memory_space<smem>>
    %c0_1 = arith.constant 0 : index
    %c0_2 = arith.constant 0 : index
    %2 = vector.load %arg2[%c0_1, %c0_2] : memref<8x1xf32, #tpu.memory_space<vmem>>, vector<8x1xf32>
    %3 = vector.broadcast %0 : f32 to vector<8x1xf32>
    %4 = arith.mulf %2, %3 : vector<8x1xf32>
    %5 = vector.broadcast %1 : f32 to vector<8x1xf32>
    %6 = arith.addf %4, %5 : vector<8x1xf32>
    %c0_3 = arith.constant 0 : index
    %c0_4 = arith.constant 0 : index
    %7 = vector.load %arg3[%c0_3, %c0_4] : memref<8x1xf32, #tpu.memory_space<vmem>>, vector<8x1xf32>
    tpu.vector_store %arg3[%c0_3, %c0_4], %6 {strides = array<i32>} : memref<8x1xf32, #tpu.memory_space<vmem>>, vector<8x1xf32>,
    return
  }
}

</mosaic_0001>

<llo_original>
// kernel: tpu_custom_call.1
$region0: #{tpu_custom_call.1}
  #allocation0 [shape = 'u32[]', space=smem, size = 0x4, offset = 0x4, fixed_abs, tag = 'smem constant byte address 0x4 - core index']
  #allocation1 [shape = 'u32[144,128]{1,0:T(1,128)}', space=vmem, size = 0x12000, scoped, tag = 'internal scratch']
  #allocation2 [shape = 'f32[1]{0:T(128)S(6)}', space=smem, size = 0x200, scoped, tag = 'scoped memory for tpu_custom_call.1']
  #allocation3 [shape = 'f32[1]{0:T(128)S(6)}', space=smem, size = 0x200, scoped, tag = 'scoped memory for tpu_custom_call.1']
  %s0 = inlined_call_operand.<no memory space> [shape: f32[1], index: 0, kind: input, shape index: {}]
  %s1 = inlined_call_operand.<no memory space> [shape: f32[1], index: 1, kind: input, shape index: {}]
  %s2 = inlined_call_operand.vmem [shape: f32[8,1], index: 2, kind: input, shape index: {}]
  %s3 = inlined_call_operand.vmem [shape: f32[8,1], index: 3, kind: output, shape index: {}]
  %s4 = sld [smem:[#allocation0]]
  $region22: #{tpu_custom_call.1} parent=0
    _
  %s6 = ssub.s32 1, %s4
  %s7 = scalar_select 0, %s6, %s4
  %8 = sst [smem:[#allocation2]] %s0
  %9 = sst [smem:[#allocation3]] %s1
  // Predicated region
  $region2: #{tpu_custom_call.1} parent=0 // pred_check
    _
  $region3: #{tpu_custom_call.1} parent=0 // pred_check_branch
    %11 = sbr.rel (0) target = $region5
  $region4: #{tpu_custom_call.1} parent=0 // pred_region
    _
  $region5: #{tpu_custom_call.1} parent=0 // pred_fallthru
    _
  // Predicated region
  $region6: #{tpu_custom_call.1} parent=0 // pred_check
    _
  $region7: #{tpu_custom_call.1} parent=0 // pred_check_branch
    %13 = sbr.rel (0) target = $region9
  $region8: #{tpu_custom_call.1} parent=0 // pred_region
    _
  $region9: #{tpu_custom_call.1} parent=0 // pred_fallthru
    _
  // Predicated region
  $region10: #{tpu_custom_call.1} parent=0 // pred_check
    _
  $region11: #{tpu_custom_call.1} parent=0 // pred_check_branch
    %15 = sbr.rel (0) target = $region13
  $region12: #{tpu_custom_call.1} parent=0 // pred_region
    _
  $region13: #{tpu_custom_call.1} parent=0 // pred_fallthru
    _
  %s16 = sld [smem:[#allocation2]]
  %s17 = sld [smem:[#allocation3]]
  %v18 = vld [vmem:[%s2] sm:$0xff]
  %v19 = vstv %s16
  %v20 = vmul.f32 %v18, %v19
  %v21 = vstv %s17
  %v22 = vadd.f32 %v20, %v21
  %vm23 = vcmask 7168
  %24 = vst.msk [vmem:[%s3] sm:$0xff] %vm23, %v22
  // Predicated region
  $region14: #{tpu_custom_call.1} parent=0 // pred_check
    _
  $region15: #{tpu_custom_call.1} parent=0 // pred_check_branch
    %26 = sbr.rel (0) target = $region17
  $region16: #{tpu_custom_call.1} parent=0 // pred_region
    _
  $region17: #{tpu_custom_call.1} parent=0 // pred_fallthru
    _
  // Predicated region
  $region18: #{tpu_custom_call.1} parent=0 // pred_check
    _
  $region19: #{tpu_custom_call.1} parent=0 // pred_check_branch
    %28 = sbr.rel (0) target = $region21
  $region20: #{tpu_custom_call.1} parent=0 // pred_region
    _
  $region21: #{tpu_custom_call.1} parent=0 // pred_fallthru
    _

</llo_original>
